<compile_context>
chip_gen: v7x
topology: tpu7x:2x2x1
jax: 0.10.0
libtpu: 0.0.40
codegen_flags: <defaults>
</compile_context>

<pallas_src>
import functools

import jax
import jax.numpy as jnp
from jax import lax
from jax.experimental import pallas as pl
from jax.experimental.pallas import tpu as pltpu


def _round_up(n, m):
    return ((n + m - 1) // m) * m


def bitpred_kernel(x_ref, w1_ref, w2_ref, w36_ref, w7_ref, b_ref, o_ref, *,
                   act_dtype):
    """Refs:
      x_ref   : [Bt, ci]        f32   (original row-major layout, no host-side transpose)
      w1_ref  : [c2, ci]        bf16/f32
      w2_ref  : [c3, c2]        bf16/f32
      w36_ref : [4, c3, c3]     bf16/f32   (layers 3..6 packed)
      w7_ref  : [1, c3]         bf16/f32
      b_ref   : [max_out, 7]    f32        (bias of layer j+1 in column j, zero padded)
      o_ref   : [1, Bt]         f32        (lane-dense sigmoid output)
    """
    c2 = w1_ref.shape[0]
    c3 = w2_ref.shape[0]
    w_dtype = w1_ref.dtype  # bf16 matmul inputs, f32 MXU accumulation

    def bias(col, out_dim):
        return b_ref[0:out_dim, col:col + 1]          # [out, 1] f32, broadcasts on lanes

    def leaky(v):
        # Equivalent to LeakyReLU(0.01) for slope < 1: mul + max (2 VALU ops).
        return jnp.maximum(v, 0.01 * v)

    # Layer 1: contract ci of W1 [c2, ci] against ci of x [Bt, ci] -> [c2, Bt].
    # Batch lands on the 128-lane axis; no explicit transpose needed (MXU contraction).
    x = x_ref[...].astype(w_dtype)
    h = lax.dot_general(w1_ref[...], x, (((1,), (1,)), ((), ())),
                        preferred_element_type=jnp.float32)
    h = leaky(h + bias(0, c2)).astype(act_dtype)       # [c2, Bt]

    def lin(h, w, col, out_dim):
        # h: [in, Bt] ; w: [out, in] -> [out, Bt] f32
        acc = jnp.dot(w, h.astype(w_dtype), preferred_element_type=jnp.float32)
        return acc + bias(col, out_dim)

    h = leaky(lin(h, w2_ref[...], 1, c3)).astype(act_dtype)   # [c3, Bt]
    for k in range(4):                                        # layers 3..6
        h = leaky(lin(h, w36_ref[k], 2 + k, c3)).astype(act_dtype)
    h = lin(h, w7_ref[...], 6, 1)                             # [1, Bt] f32

    # Sigmoid via a single EUP tanh: sigmoid(h) = 0.5 * tanh(0.5 * h) + 0.5.
    o_ref[...] = (0.5 * jnp.tanh(0.5 * h) + 0.5).astype(o_ref.dtype)


def bitpred_forward(x, params, *, block_b=2048, weights_dtype=jnp.bfloat16,
                    activations_dtype=jnp.float32):
    """x: [B, ci] f32.  params: 7 tuples of (W [out, in], b [out]) in PyTorch layout.

    activations_dtype: keep jnp.float32 on v5e (no bf16 VPU/EUP); jnp.bfloat16 is a
    good choice on v6e / v7x to halve elementwise/store pressure.
    """
    B, ci = x.shape
    assert len(params) == 7
    ws = [w for (w, _) in params]
    bs = [b for (_, b) in params]
    c2 = ws[0].shape[0]
    c3 = ws[1].shape[0]
    assert ws[0].shape == (c2, ci) and ws[1].shape == (c3, c2)
    assert ws[6].shape == (1, c3)

    # Batch tile selection:
    #  * multiple of 128 (lane axis), hard cap 8192 -> ~10 MiB live VMEM worst case,
    #    inside the 32 MiB scoped default even on v7x (64 MiB physical).
    #  * also capped at round_up(ceil(B/2), 128) so the grid keeps >= 2 parallel steps
    #    (v7x megacore sharding) whenever B allows it.
    assert block_b % 128 == 0 and 128 <= block_b <= 8192, \
        "block_b must be a multiple of 128 in [128, 8192]"
    block_b = min(block_b, max(128, _round_up(pl.cdiv(B, 2), 128)))
    num_blocks = pl.cdiv(B, block_b)   # ragged last block handled by Pallas masking

    # Pack weights: bf16 for the MXU (f32 accumulation happens in-kernel).
    w1 = ws[0].astype(weights_dtype)                  # [c2, ci]
    w2 = ws[1].astype(weights_dtype)                  # [c3, c2]
    w36 = jnp.stack(ws[2:6]).astype(weights_dtype)    # [4, c3, c3]
    w7 = ws[6].astype(weights_dtype)                  # [1, c3]

    # Pack all 7 biases into one [max_out, 7] f32 array (column j = layer j+1).
    max_out = max(c2, c3, 1)
    b_pack = jnp.stack(
        [jnp.pad(b.astype(jnp.float32).reshape(-1), (0, max_out - b.size))
         for b in bs],
        axis=1)                                       # [max_out, 7]

    in_specs = [
        pl.BlockSpec((block_b, ci), lambda i: (i, 0)),        # x tile, no host transpose
        pl.BlockSpec(w1.shape, lambda i: (0, 0)),
        pl.BlockSpec(w2.shape, lambda i: (0, 0)),
        pl.BlockSpec(w36.shape, lambda i: (0, 0, 0)),
        pl.BlockSpec(w7.shape, lambda i: (0, 0)),
        pl.BlockSpec(b_pack.shape, lambda i: (0, 0)),
    ]
    out_spec = pl.BlockSpec((1, block_b), lambda i: (0, i))   # lane-dense output

    out_t = pl.pallas_call(
        functools.partial(bitpred_kernel, act_dtype=activations_dtype),
        out_shape=jax.ShapeDtypeStruct((1, B), jnp.float32),
        grid_spec=pltpu.PrefetchScalarGridSpec(
            num_scalar_prefetch=0,
            grid=(num_blocks,),
            in_specs=in_specs,
            out_specs=out_spec,
        ),
        compiler_params=pltpu.CompilerParams(
            dimension_semantics=("parallel",)),   # batch tiles shard across v7x TCs
    )(x.astype(jnp.float32), w1, w2, w36, w7, b_pack)

    # [1, B] -> [B, 1]; contiguous either way, so this is a trivial trailing op.
    return out_t.reshape(B, 1)


def init_params(key, ci, c2, c3):
    """PyTorch-layout init: W [out, in], b [out], U(-1/sqrt(fan_in), +1/sqrt(fan_in))."""
    dims = [(ci, c2), (c2, c3), (c3, c3), (c3, c3), (c3, c3), (c3, c3), (c3, 1)]
    params = []
    for fan_in, fan_out in dims:
        key, kw, kb = jax.random.split(key, 3)
        bound = 1.0 / jnp.sqrt(jnp.float32(fan_in))
        w = jax.random.uniform(kw, (fan_out, fan_in), jnp.float32, -bound, bound)
        b = jax.random.uniform(kb, (fan_out,), jnp.float32, -bound, bound)
        params.append((w, b))
    return params


def reference_forward(x, params, weights_dtype=jnp.float32):
    """Pure-JAX reference using the same bf16-input / f32-accumulate matmul math."""
    h = x.astype(jnp.float32)
    n = len(params)
    for i, (w, b) in enumerate(params):
        acc = jnp.dot(h.astype(weights_dtype), w.astype(weights_dtype).T,
                      preferred_element_type=jnp.float32)
        h = acc + b.astype(jnp.float32)[None, :]
        if i < n - 1:
            h = jnp.where(h >= 0, h, 0.01 * h)
        else:
            h = jax.nn.sigmoid(h)
    return h


if __name__ == "__main__":
    key = jax.random.PRNGKey(0)
    k_x, k_p = jax.random.split(key)

    # Small shapes consistent with the module; B=512 -> block_b auto-caps to 256,
    # giving a 2-step "parallel" grid (exercises pipelining / megacore split).
    B, ci, c2, c3 = 512, 32, 64, 32
    x = jax.random.normal(k_x, (B, ci), jnp.float32)
    params = init_params(k_p, ci, c2, c3)

    out = bitpred_forward(x, params, block_b=2048, weights_dtype=jnp.bfloat16)
    out = jax.block_until_ready(out)

    ref = reference_forward(x, params, weights_dtype=jnp.bfloat16)
    assert out.shape == (B, 1)
    assert jnp.allclose(out, ref, atol=5e-3, rtol=5e-3), \
        float(jnp.max(jnp.abs(out - ref)))

    print("KERNEL_OK")
</pallas_src>

<mosaic_0001>
module attributes {stable_mosaic.version = 11 : i64} {
  func.func @bitpred_kernel(%arg0: i32, %arg1: memref<256x32xf32, #tpu.memory_space<vmem>>, %arg2: memref<64x32xbf16, #tpu.memory_space<vmem>>, %arg3: memref<32x64xbf16, #tpu.memory_space<vmem>>, %arg4: memref<4x32x32xbf16, #tpu.memory_space<vmem>>, %arg5: memref<1x32xbf16, #tpu.memory_space<vmem>>, %arg6: memref<64x7xf32, #tpu.memory_space<vmem>>, %arg7: memref<1x256xf32, #tpu.memory_space<vmem>>) attributes {dimension_semantics = [#tpu.dimension_semantics<parallel>], iteration_bounds = array<i64: 2>, scalar_prefetch = 0 : i64, scratch_operands = 0 : i64, tpu.core_type = #tpu.core_type<tc>, window_params = [{transform_indices = @transform_0, window_bounds = array<i64: 256, 32>}, {pipeline_mode = #tpu.pipeline_mode<synchronous>, transform_indices = @transform_1, window_bounds = array<i64: 64, 32>}, {pipeline_mode = #tpu.pipeline_mode<synchronous>, transform_indices = @transform_2, window_bounds = array<i64: 32, 64>}, {pipeline_mode = #tpu.pipeline_mode<synchronous>, transform_indices = @transform_3, window_bounds = array<i64: 4, 32, 32>}, {pipeline_mode = #tpu.pipeline_mode<synchronous>, transform_indices = @transform_4, window_bounds = array<i64: 1, 32>}, {pipeline_mode = #tpu.pipeline_mode<synchronous>, transform_indices = @transform_5, window_bounds = array<i64: 64, 7>}, {transform_indices = @transform_6, window_bounds = array<i64: 1, 256>}]} {
    %c0 = arith.constant 0 : index
    %c0_0 = arith.constant 0 : index
    %0 = vector.load %arg1[%c0, %c0_0] : memref<256x32xf32, #tpu.memory_space<vmem>>, vector<256x32xf32>
    %1 = arith.truncf %0 : vector<256x32xf32> to vector<256x32xbf16>
    %c0_1 = arith.constant 0 : index
    %c0_2 = arith.constant 0 : index
    %2 = vector.load %arg2[%c0_1, %c0_2] : memref<64x32xbf16, #tpu.memory_space<vmem>>, vector<64x32xbf16>
    %cst = arith.constant dense<0.000000e+00> : vector<64x256xf32>
    %3 = tpu.matmul %2, %1, %cst {dimension_numbers = #tpu.dot_dimension_numbers<[1], [1], [0], [0], [0, 0, 1, 0], [], []>} : vector<64x32xbf16>, vector<256x32xbf16>, vector<64x256xf32> -> vector<64x256xf32>
    %c0_3 = arith.constant 0 : index
    %c0_4 = arith.constant 0 : index
    %4 = vector.load %arg6[%c0_3, %c0_4] : memref<64x7xf32, #tpu.memory_space<vmem>>, vector<64x1xf32>
    %5 = vector.broadcast %4 : vector<64x1xf32> to vector<64x256xf32>
    %6 = arith.addf %3, %5 : vector<64x256xf32>
    %cst_5 = arith.constant 0.00999999977 : f32
    %7 = vector.broadcast %cst_5 : f32 to vector<64x256xf32>
    %8 = arith.mulf %7, %6 : vector<64x256xf32>
    %9 = arith.maximumf %6, %8 : vector<64x256xf32>
    %c0_6 = arith.constant 0 : index
    %c0_7 = arith.constant 0 : index
    %10 = vector.load %arg3[%c0_6, %c0_7] : memref<32x64xbf16, #tpu.memory_space<vmem>>, vector<32x64xbf16>
    %11 = arith.truncf %9 : vector<64x256xf32> to vector<64x256xbf16>
    %cst_8 = arith.constant dense<0.000000e+00> : vector<32x256xf32>
    %12 = tpu.matmul %10, %11, %cst_8 {dimension_numbers = #tpu.dot_dimension_numbers<[1], [0], [0], [1], [0, 0, 1, 1], [], []>} : vector<32x64xbf16>, vector<64x256xbf16>, vector<32x256xf32> -> vector<32x256xf32>
    %c0_9 = arith.constant 0 : index
    %c1 = arith.constant 1 : index
    %13 = vector.load %arg6[%c0_9, %c1] : memref<64x7xf32, #tpu.memory_space<vmem>>, vector<32x1xf32>
    %14 = vector.broadcast %13 : vector<32x1xf32> to vector<32x256xf32>
    %15 = arith.addf %12, %14 : vector<32x256xf32>
    %cst_10 = arith.constant 0.00999999977 : f32
    %16 = vector.broadcast %cst_10 : f32 to vector<32x256xf32>
    %17 = arith.mulf %16, %15 : vector<32x256xf32>
    %18 = arith.maximumf %15, %17 : vector<32x256xf32>
    %c0_11 = arith.constant 0 : index
    %c0_12 = arith.constant 0 : index
    %c0_13 = arith.constant 0 : index
    %19 = vector.load %arg4[%c0_11, %c0_12, %c0_13] : memref<4x32x32xbf16, #tpu.memory_space<vmem>>, vector<1x32x32xbf16>
    %20 = vector.shape_cast %19 : vector<1x32x32xbf16> to vector<32x32xbf16>
    %21 = arith.truncf %18 : vector<32x256xf32> to vector<32x256xbf16>
    %cst_14 = arith.constant dense<0.000000e+00> : vector<32x256xf32>
    %22 = tpu.matmul %20, %21, %cst_14 {dimension_numbers = #tpu.dot_dimension_numbers<[1], [0], [0], [1], [0, 0, 1, 1], [], []>} : vector<32x32xbf16>, vector<32x256xbf16>, vector<32x256xf32> -> vector<32x256xf32>
    %c0_15 = arith.constant 0 : index
    %c2 = arith.constant 2 : index
    %23 = vector.load %arg6[%c0_15, %c2] : memref<64x7xf32, #tpu.memory_space<vmem>>, vector<32x1xf32>
    %24 = vector.broadcast %23 : vector<32x1xf32> to vector<32x256xf32>
    %25 = arith.addf %22, %24 : vector<32x256xf32>
    %cst_16 = arith.constant 0.00999999977 : f32
    %26 = vector.broadcast %cst_16 : f32 to vector<32x256xf32>
    %27 = arith.mulf %26, %25 : vector<32x256xf32>
    %28 = arith.maximumf %25, %27 : vector<32x256xf32>
    %c1_17 = arith.constant 1 : index
    %c0_18 = arith.constant 0 : index
    %c0_19 = arith.constant 0 : index
    %29 = vector.load %arg4[%c1_17, %c0_18, %c0_19] : memref<4x32x32xbf16, #tpu.memory_space<vmem>>, vector<1x32x32xbf16>
    %30 = vector.shape_cast %29 : vector<1x32x32xbf16> to vector<32x32xbf16>
    %31 = arith.truncf %28 : vector<32x256xf32> to vector<32x256xbf16>
    %cst_20 = arith.constant dense<0.000000e+00> : vector<32x256xf32>
    %32 = tpu.matmul %30, %31, %cst_20 {dimension_numbers = #tpu.dot_dimension_numbers<[1], [0], [0], [1], [0, 0, 1, 1], [], []>} : vector<32x32xbf16>, vector<32x256xbf16>, vector<32x256xf32> -> vector<32x256xf32>
    %c0_21 = arith.constant 0 : index
    %c3 = arith.constant 3 : index
    %33 = vector.load %arg6[%c0_21, %c3] : memref<64x7xf32, #tpu.memory_space<vmem>>, vector<32x1xf32>
    %34 = vector.broadcast %33 : vector<32x1xf32> to vector<32x256xf32>
    %35 = arith.addf %32, %34 : vector<32x256xf32>
    %cst_22 = arith.constant 0.00999999977 : f32
    %36 = vector.broadcast %cst_22 : f32 to vector<32x256xf32>
    %37 = arith.mulf %36, %35 : vector<32x256xf32>
    %38 = arith.maximumf %35, %37 : vector<32x256xf32>
    %c2_23 = arith.constant 2 : index
    %c0_24 = arith.constant 0 : index
    %c0_25 = arith.constant 0 : index
    %39 = vector.load %arg4[%c2_23, %c0_24, %c0_25] : memref<4x32x32xbf16, #tpu.memory_space<vmem>>, vector<1x32x32xbf16>
    %40 = vector.shape_cast %39 : vector<1x32x32xbf16> to vector<32x32xbf16>
    %41 = arith.truncf %38 : vector<32x256xf32> to vector<32x256xbf16>
    %cst_26 = arith.constant dense<0.000000e+00> : vector<32x256xf32>
    %42 = tpu.matmul %40, %41, %cst_26 {dimension_numbers = #tpu.dot_dimension_numbers<[1], [0], [0], [1], [0, 0, 1, 1], [], []>} : vector<32x32xbf16>, vector<32x256xbf16>, vector<32x256xf32> -> vector<32x256xf32>
    %c0_27 = arith.constant 0 : index
    %c4 = arith.constant 4 : index
    %43 = vector.load %arg6[%c0_27, %c4] : memref<64x7xf32, #tpu.memory_space<vmem>>, vector<32x1xf32>
    %44 = vector.broadcast %43 : vector<32x1xf32> to vector<32x256xf32>
    %45 = arith.addf %42, %44 : vector<32x256xf32>
    %cst_28 = arith.constant 0.00999999977 : f32
    %46 = vector.broadcast %cst_28 : f32 to vector<32x256xf32>
    %47 = arith.mulf %46, %45 : vector<32x256xf32>
    %48 = arith.maximumf %45, %47 : vector<32x256xf32>
    %c3_29 = arith.constant 3 : index
    %c0_30 = arith.constant 0 : index
    %c0_31 = arith.constant 0 : index
    %49 = vector.load %arg4[%c3_29, %c0_30, %c0_31] : memref<4x32x32xbf16, #tpu.memory_space<vmem>>, vector<1x32x32xbf16>
    %50 = vector.shape_cast %49 : vector<1x32x32xbf16> to vector<32x32xbf16>
    %51 = arith.truncf %48 : vector<32x256xf32> to vector<32x256xbf16>
    %cst_32 = arith.constant dense<0.000000e+00> : vector<32x256xf32>
    %52 = tpu.matmul %50, %51, %cst_32 {dimension_numbers = #tpu.dot_dimension_numbers<[1], [0], [0], [1], [0, 0, 1, 1], [], []>} : vector<32x32xbf16>, vector<32x256xbf16>, vector<32x256xf32> -> vector<32x256xf32>
    %c0_33 = arith.constant 0 : index
    %c5 = arith.constant 5 : index
    %53 = vector.load %arg6[%c0_33, %c5] : memref<64x7xf32, #tpu.memory_space<vmem>>, vector<32x1xf32>
    %54 = vector.broadcast %53 : vector<32x1xf32> to vector<32x256xf32>
    %55 = arith.addf %52, %54 : vector<32x256xf32>
    %cst_34 = arith.constant 0.00999999977 : f32
    %56 = vector.broadcast %cst_34 : f32 to vector<32x256xf32>
    %57 = arith.mulf %56, %55 : vector<32x256xf32>
    %58 = arith.maximumf %55, %57 : vector<32x256xf32>
    %c0_35 = arith.constant 0 : index
    %c0_36 = arith.constant 0 : index
    %59 = vector.load %arg5[%c0_35, %c0_36] : memref<1x32xbf16, #tpu.memory_space<vmem>>, vector<1x32xbf16>
    %60 = arith.truncf %58 : vector<32x256xf32> to vector<32x256xbf16>
    %cst_37 = arith.constant dense<0.000000e+00> : vector<1x256xf32>
    %61 = tpu.matmul %59, %60, %cst_37 {dimension_numbers = #tpu.dot_dimension_numbers<[1], [0], [0], [1], [0, 0, 1, 1], [], []>} : vector<1x32xbf16>, vector<32x256xbf16>, vector<1x256xf32> -> vector<1x256xf32>
    %c0_38 = arith.constant 0 : index
    %c6 = arith.constant 6 : index
    %62 = vector.load %arg6[%c0_38, %c6] : memref<64x7xf32, #tpu.memory_space<vmem>>, vector<1x1xf32>
    %63 = vector.broadcast %62 : vector<1x1xf32> to vector<1x256xf32>
    %64 = arith.addf %61, %63 : vector<1x256xf32>
    %cst_39 = arith.constant 5.000000e-01 : f32
    %65 = vector.broadcast %cst_39 : f32 to vector<1x256xf32>
    %66 = arith.mulf %65, %64 : vector<1x256xf32>
    %67 = math.tanh %66 : vector<1x256xf32>
    %cst_40 = arith.constant 5.000000e-01 : f32
    %68 = vector.broadcast %cst_40 : f32 to vector<1x256xf32>
    %69 = arith.mulf %68, %67 : vector<1x256xf32>
    %cst_41 = arith.constant 5.000000e-01 : f32
    %70 = vector.broadcast %cst_41 : f32 to vector<1x256xf32>
    %71 = arith.addf %69, %70 : vector<1x256xf32>
    %c0_42 = arith.constant 0 : index
    %c0_43 = arith.constant 0 : index
    %72 = vector.load %arg7[%c0_42, %c0_43] : memref<1x256xf32, #tpu.memory_space<vmem>>, vector<1x256xf32>
    tpu.vector_store %arg7[%c0_42, %c0_43], %71 {strides = array<i32>} : memref<1x256xf32, #tpu.memory_space<vmem>>, vector<1x256xf32>,
    return
  }
  func.func @transform_0(%arg0: i32) -> (i32, i32) {
    %c0_i32 = arith.constant 0 : i32
    %c0_i32_0 = arith.constant 0 : i32
    return %arg0, %c0_i32 : i32, i32
  }
  func.func @transform_1(%arg0: i32) -> (i32, i32) {
    %c0_i32 = arith.constant 0 : i32
    %c0_i32_0 = arith.constant 0 : i32
    %c0_i32_1 = arith.constant 0 : i32
    return %c0_i32, %c0_i32_0 : i32, i32
  }
  func.func @transform_2(%arg0: i32) -> (i32, i32) {
    %c0_i32 = arith.constant 0 : i32
    %c0_i32_0 = arith.constant 0 : i32
    %c0_i32_1 = arith.constant 0 : i32
    return %c0_i32, %c0_i32_0 : i32, i32
  }
  func.func @transform_3(%arg0: i32) -> (i32, i32, i32) {
    %c0_i32 = arith.constant 0 : i32
    %c0_i32_0 = arith.constant 0 : i32
    %c0_i32_1 = arith.constant 0 : i32
    %c0_i32_2 = arith.constant 0 : i32
    return %c0_i32, %c0_i32_0, %c0_i32_1 : i32, i32, i32
  }
  func.func @transform_4(%arg0: i32) -> (i32, i32) {
    %c0_i32 = arith.constant 0 : i32
    %c0_i32_0 = arith.constant 0 : i32
    %c0_i32_1 = arith.constant 0 : i32
    return %c0_i32, %c0_i32_0 : i32, i32
  }
  func.func @transform_5(%arg0: i32) -> (i32, i32) {
    %c0_i32 = arith.constant 0 : i32
    %c0_i32_0 = arith.constant 0 : i32
    %c0_i32_1 = arith.constant 0 : i32
    return %c0_i32, %c0_i32_0 : i32, i32
  }
  func.func @transform_6(%arg0: i32) -> (i32, i32) {
    %c0_i32 = arith.constant 0 : i32
    %c0_i32_0 = arith.constant 0 : i32
    return %c0_i32, %arg0 : i32, i32
  }
}

</mosaic_0001>

<llo_original>
// kernel: tpu_custom_call.1
$region0: #{tpu_custom_call.1}
  #allocation0 [shape = 'u32[]', space=smem, size = 0x4, offset = 0x4, fixed_abs, tag = 'smem constant byte address 0x4 - core index']
  #allocation1 [shape = 'u32[144,128]{1,0:T(1,128)}', space=vmem, size = 0x12000, scoped, tag = 'internal scratch']
  %s0 = inlined_call_operand.vmem [shape: f32[512,32], index: 0, kind: input, shape index: {}]
  %s1 = inlined_call_operand.vmem [shape: bf16[64,32], index: 1, kind: input, shape index: {}]
  %s2 = inlined_call_operand.vmem [shape: bf16[32,64], index: 2, kind: input, shape index: {}]
  %s3 = inlined_call_operand.vmem [shape: bf16[4,32,32], index: 3, kind: input, shape index: {}]
  %s4 = inlined_call_operand.vmem [shape: bf16[1,32], index: 4, kind: input, shape index: {}]
  %s5 = inlined_call_operand.vmem [shape: f32[64,7], index: 5, kind: input, shape index: {}]
  %s6 = inlined_call_operand.hbm [shape: f32[1,512], index: 6, kind: output, shape index: {}]
  %s7 = sld [smem:[#allocation0]]
  $region57: #{tpu_custom_call.1} parent=0
    _
  %s9 = ssub.s32 1, %s7
  %s10 = scalar_select 0, %s9, %s7
  $region1: #{tpu_custom_call.1} parent=0
    #allocation2 [shape = 'u8[2048]{0}', space=vmem, size = 0x800, scoped, tag = 'output window, operand 0']
    #allocation3 [shape = 's32[2]{0}', space=sflag, size = 0x8, scoped, tag = 'scoped memory for tpu_custom_call.1']
    %11 = vsyncpa [#allocation3], 0
    %s12 = scalar_lea.sflag [#allocation3], 1
    %13 = vsyncpa %s12, 0
    loop: start=0, step=1, limit=4
    $region2: #{tpu_custom_call.1} parent=1 // loop_pre_header
      _
    $region3: #{tpu_custom_call.1} parent=1 // loop_header
      %s15 = sphi 0, %s19
      %p16 = scmp.ge.s32.totalorder %s15, 4
      %s25 = sphi 0, %s27
      %s28 = sphi 0, %s25
      %s29 = sphi 0, %s28
      %s45 = sphi 0, %s29
      %s49 = sphi 0, %s49
      %s51 = sphi 0, %s49
      %s52 = sphi 0, %s51
      %s66 = sphi 0, %s52
      %s70 = sphi 0, %s70
      %s72 = sphi 0, %s70
      %s73 = sphi 0, %s72
      %s87 = sphi 0, %s73
      %s91 = sphi 0, %s91
      %s93 = sphi 0, %s91
      %s94 = sphi 0, %s93
      %s108 = sphi 0, %s94
      %s112 = sphi 0, %s112
      %s114 = sphi 0, %s112
      %s115 = sphi 0, %s114
      %s129 = sphi 0, %s115
      %s133 = sphi 0, %s133
      %s135 = sphi 0, %s133
      %s136 = sphi 0, %s135
      %s150 = sphi 0, %s136
      %s156 = sphi 0, %s158
      %s159 = sphi 0, %s156
      %s160 = sphi 0, %s159
      %s176 = sphi 0, %s160
    $region4: #{tpu_custom_call.1} parent=1 // loop_header_branch
      %18 = sbr.rel (%p16) target = $region8
    $region5: #{tpu_custom_call.1} parent=1 // loop_body
      %s20 = ssub.s32 %s15, 1
      %s21 = ssub.s32 %s15, 2
      %s22 = sadd.s32 %s15, 1
      %s23 = ssub.s32 %s15, %s22
      %p24 = scmp.eq.s32.totalorder %s23, 0
      %s26 = sadd.s32 %s25, 1
      %s27 = scalar_select %p24, %s25, %s26
      %p30 = pneg %p24
      %p31 = scmp.eq.s32.totalorder %s15, 1
      %p32 = por %p30, %p31
      %p33 = scmp.ne.s32.totalorder %s25, %s28
      %p34 = scmp.eq.s32.totalorder %s15, 0
      %p35 = por %p33, %p34
      %p36 = scmp.ne.s32.totalorder %s25, %s28
      %p37 = scmp.eq.s32.totalorder %s20, 1
      %p38 = por %p36, %p37
      %p39 = scmp.ne.s32.totalorder %s28, %s29
      %p40 = scmp.eq.s32.totalorder %s20, 0
      %p41 = por %p39, %p40
      %p42 = scmp.ne.s32.totalorder %s28, %s29
      %p43 = scmp.eq.s32.totalorder %s21, 1
      %p44 = por %p42, %p43
      %p46 = scmp.ne.s32.totalorder %s29, %s45
      %p47 = scmp.eq.s32.totalorder %s21, 0
      %p48 = por %p46, %p47
      %s50 = sadd.s32 %s49, 1
      %p53 = scmp.eq.s32.totalorder %s15, 1
      %p54 = scmp.ne.s32.totalorder %s49, %s51
      %p55 = scmp.eq.s32.totalorder %s15, 0
      %p56 = por %p54, %p55
      %p57 = scmp.ne.s32.totalorder %s49, %s51
      %p58 = scmp.eq.s32.totalorder %s20, 1
      %p59 = por %p57, %p58
      %p60 = scmp.ne.s32.totalorder %s51, %s52
      %p61 = scmp.eq.s32.totalorder %s20, 0
      %p62 = por %p60, %p61
      %p63 = scmp.ne.s32.totalorder %s51, %s52
      %p64 = scmp.eq.s32.totalorder %s21, 1
      %p65 = por %p63, %p64
      %p67 = scmp.ne.s32.totalorder %s52, %s66
      %p68 = scmp.eq.s32.totalorder %s21, 0
      %p69 = por %p67, %p68
      %s71 = sadd.s32 %s70, 1
      %p74 = scmp.eq.s32.totalorder %s15, 1
      %p75 = scmp.ne.s32.totalorder %s70, %s72
      %p76 = scmp.eq.s32.totalorder %s15, 0
      %p77 = por %p75, %p76
      %p78 = scmp.ne.s32.totalorder %s70, %s72
      %p79 = scmp.eq.s32.totalorder %s20, 1
      %p80 = por %p78, %p79
      %p81 = scmp.ne.s32.totalorder %s72, %s73
      %p82 = scmp.eq.s32.totalorder %s20, 0
      %p83 = por %p81, %p82
      %p84 = scmp.ne.s32.totalorder %s72, %s73
      %p85 = scmp.eq.s32.totalorder %s21, 1
      %p86 = por %p84, %p85
      %p88 = scmp.ne.s32.totalorder %s73, %s87
      %p89 = scmp.eq.s32.totalorder %s21, 0
      %p90 = por %p88, %p89
      %s92 = sadd.s32 %s91, 1
      %p95 = scmp.eq.s32.totalorder %s15, 1
      %p96 = scmp.ne.s32.totalorder %s91, %s93
      %p97 = scmp.eq.s32.totalorder %s15, 0
      %p98 = por %p96, %p97
      %p99 = scmp.ne.s32.totalorder %s91, %s93
      %p100 = scmp.eq.s32.totalorder %s20, 1
      %p101 = por %p99, %p100
      %p102 = scmp.ne.s32.totalorder %s93, %s94
      %p103 = scmp.eq.s32.totalorder %s20, 0
      %p104 = por %p102, %p103
      %p105 = scmp.ne.s32.totalorder %s93, %s94
      %p106 = scmp.eq.s32.totalorder %s21, 1
      %p107 = por %p105, %p106
      %p109 = scmp.ne.s32.totalorder %s94, %s108
      %p110 = scmp.eq.s32.totalorder %s21, 0
      %p111 = por %p109, %p110
      %s113 = sadd.s32 %s112, 1
      %p116 = scmp.eq.s32.totalorder %s15, 1
      %p117 = scmp.ne.s32.totalorder %s112, %s114
      %p118 = scmp.eq.s32.totalorder %s15, 0
      %p119 = por %p117, %p118
      %p120 = scmp.ne.s32.totalorder %s112, %s114
      %p121 = scmp.eq.s32.totalorder %s20, 1
      %p122 = por %p120, %p121
      %p123 = scmp.ne.s32.totalorder %s114, %s115
      %p124 = scmp.eq.s32.totalorder %s20, 0
      %p125 = por %p123, %p124
      %p126 = scmp.ne.s32.totalorder %s114, %s115
      %p127 = scmp.eq.s32.totalorder %s21, 1
      %p128 = por %p126, %p127
      %p130 = scmp.ne.s32.totalorder %s115, %s129
      %p131 = scmp.eq.s32.totalorder %s21, 0
      %p132 = por %p130, %p131
      %s134 = sadd.s32 %s133, 1
      %p137 = scmp.eq.s32.totalorder %s15, 1
      %p138 = scmp.ne.s32.totalorder %s133, %s135
      %p139 = scmp.eq.s32.totalorder %s15, 0
      %p140 = por %p138, %p139
      %p141 = scmp.ne.s32.totalorder %s133, %s135
      %p142 = scmp.eq.s32.totalorder %s20, 1
      %p143 = por %p141, %p142
      %p144 = scmp.ne.s32.totalorder %s135, %s136
      %p145 = scmp.eq.s32.totalorder %s20, 0
      %p146 = por %p144, %p145
      %p147 = scmp.ne.s32.totalorder %s135, %s136
      %p148 = scmp.eq.s32.totalorder %s21, 1
      %p149 = por %p147, %p148
      %p151 = scmp.ne.s32.totalorder %s136, %s150
      %p152 = scmp.eq.s32.totalorder %s21, 0
      %p153 = por %p151, %p152
      %s154 = ssub.s32 %s15, %s22
      %p155 = scmp.eq.s32.totalorder %s154, 0
      %s157 = sadd.s32 %s156, 1
      %s158 = scalar_select %p155, %s156, %s157
      %p161 = pneg %p155
      %p162 = scmp.eq.s32.totalorder %s15, 1
      %p163 = por %p161, %p162
      %p164 = scmp.ne.s32.totalorder %s156, %s159
      %p165 = scmp.eq.s32.totalorder %s15, 0
      %p166 = por %p164, %p165
      %p167 = scmp.ne.s32.totalorder %s156, %s159
      %p168 = scmp.eq.s32.totalorder %s20, 1
      %p169 = por %p167, %p168
      %p170 = scmp.ne.s32.totalorder %s159, %s160
      %p171 = scmp.eq.s32.totalorder %s20, 0
      %p172 = por %p170, %p171
      %p173 = scmp.ne.s32.totalorder %s159, %s160
      %p174 = scmp.eq.s32.totalorder %s21, 1
      %p175 = por %p173, %p174
      %p177 = scmp.ne.s32.totalorder %s160, %s176
      %p178 = scmp.eq.s32.totalorder %s21, 0
      %p179 = por %p177, %p178
      %p180 = scmp.le.s32.totalorder 1, %s15
      %p181 = scmp.lt.s32.totalorder %s15, 3
      %p182 = pnand %p180, %p181
      %p183 = pneg %p182
      // Predicated region
      $region9: #{tpu_custom_call.1} parent=5 // pred_check
        _
      $region10: #{tpu_custom_call.1} parent=5 // pred_check_branch
        %185 = sbr.rel (%p182) target = $region12
      $region11: #{tpu_custom_call.1} parent=5 // pred_region
        %s186 = ssub.s32 %s15, 1
        // Predicated region
        $region13: #{tpu_custom_call.1} parent=11 // pred_check
          %p187 = pneg %p62
        $region14: #{tpu_custom_call.1} parent=11 // pred_check_branch
          %189 = sbr.rel (%p187) target = $region16
        $region15: #{tpu_custom_call.1} parent=11 // pred_region
          _
        $region16: #{tpu_custom_call.1} parent=11 // pred_fallthru
          _
        // Predicated region
        $region17: #{tpu_custom_call.1} parent=11 // pred_check
          %p190 = pneg %p83
        $region18: #{tpu_custom_call.1} parent=11 // pred_check_branch
          %192 = sbr.rel (%p190) target = $region20
        $region19: #{tpu_custom_call.1} parent=11 // pred_region
          _
        $region20: #{tpu_custom_call.1} parent=11 // pred_fallthru
          _
        // Predicated region
        $region21: #{tpu_custom_call.1} parent=11 // pred_check
          %p193 = pneg %p104
        $region22: #{tpu_custom_call.1} parent=11 // pred_check_branch
          %195 = sbr.rel (%p193) target = $region24
        $region23: #{tpu_custom_call.1} parent=11 // pred_region
          _
        $region24: #{tpu_custom_call.1} parent=11 // pred_fallthru
          _
        // Predicated region
        $region25: #{tpu_custom_call.1} parent=11 // pred_check
          %p196 = pneg %p125
        $region26: #{tpu_custom_call.1} parent=11 // pred_check_branch
          %198 = sbr.rel (%p196) target = $region28
        $region27: #{tpu_custom_call.1} parent=11 // pred_region
          _
        $region28: #{tpu_custom_call.1} parent=11 // pred_fallthru
          _
        // Predicated region
        $region29: #{tpu_custom_call.1} parent=11 // pred_check
          %p199 = pneg %p146
        $region30: #{tpu_custom_call.1} parent=11 // pred_check_branch
          %201 = sbr.rel (%p199) target = $region32
        $region31: #{tpu_custom_call.1} parent=11 // pred_region
          _
        $region32: #{tpu_custom_call.1} parent=11 // pred_fallthru
          _
      $region12: #{tpu_custom_call.1} parent=5 // pred_fallthru
        _
      %p202 = scmp.lt.s32.totalorder %s15, 2
      // Predicated region
      $region33: #{tpu_custom_call.1} parent=5 // pred_check
        %p203 = pneg %p202
      $region34: #{tpu_custom_call.1} parent=5 // pred_check_branch
        %205 = sbr.rel (%p203) target = $region36
      $region35: #{tpu_custom_call.1} parent=5 // pred_region
        // Predicated region
        $region37: #{tpu_custom_call.1} parent=35 // pred_check
          %p206 = pneg %p35
        $region38: #{tpu_custom_call.1} parent=35 // pred_check_branch
          %208 = sbr.rel (%p206) target = $region40
        $region39: #{tpu_custom_call.1} parent=35 // pred_region
          %s209 = smul.u32 32, %s15
          %p210 = scmp.lt.s32.totalorder %s209, 63
          %s211 = scalar_select %p210, %s209, 63
          %s212 = smul.addr %s211, 8
          %s213 = scalar_lea.vmem %s0, %s212
          %s214 = smul.u32 32, %s15
        $region40: #{tpu_custom_call.1} parent=35 // pred_fallthru
          _
      $region36: #{tpu_custom_call.1} parent=5 // pred_fallthru
        _
      %p215 = scmp.le.s32.totalorder 1, %s15
      %p216 = scmp.lt.s32.totalorder %s15, 3
      %p217 = pnand %p215, %p216
      %p218 = pneg %p217
      // Predicated region
      $region41: #{tpu_custom_call.1} parent=5 // pred_check
        _
      $region42: #{tpu_custom_call.1} parent=5 // pred_check_branch
        %220 = sbr.rel (%p217) target = $region44
      $region43: #{tpu_custom_call.1} parent=5 // pred_region
        %s221 = ssub.s32 %s15, 1
        %s222 = smul.u32 32, %s20
        %p223 = scmp.lt.s32.totalorder %s222, 63
        %s224 = scalar_select %p223, %s222, 63
        %s225 = smul.addr %s224, 8
        %s226 = scalar_lea.vmem %s0, %s225
        %p227 = pneg %p41
        %p228 = pneg %p38
        %p229 = pneg %p62
        %p230 = pneg %p59
        %p231 = pneg %p83
        %p232 = pneg %p80
        %p233 = pneg %p104
        %p234 = pneg %p101
        %p235 = pneg %p125
        %p236 = pneg %p122
        %p237 = pneg %p146
        %p238 = pneg %p143
        %p239 = pneg %p172
        %p240 = pneg %p169
        %s241 = sand.u32 %s159, 1
        %s242 = scalar_lea.sflag [#allocation3], %s241
        %s243 = sand.u32 %s159, 1
        %s244 = smul.addr %s243, 2
        %s245 = scalar_lea.vmem [#allocation2], %s244
        %s246 = smul.u32 32, %s20
        %p247 = scmp.lt.s32.totalorder %s246, 63
        %s248 = scalar_select %p247, %s246, 63
        %s249 = smul.addr %s248, 8
        %s250 = scalar_lea.vmem %s0, %s249
        %s251 = smul.u32 32, %s20
        %s252 = smul.u32 2, %s20
        %v254 = vld [vmem:[%s250] sm:$0xff]
        %v255 = vld [vmem:[%s250 + $0x8] sm:$0xff]
        %v256 = vld [vmem:[%s250 + $0x10] sm:$0xff]
        %v257 = vld [vmem:[%s250 + $0x18] sm:$0xff]
        %v258 = vld [vmem:[%s250 + $0x20] sm:$0xff]
        %v259 = vld [vmem:[%s250 + $0x28] sm:$0xff]
        %v260 = vld [vmem:[%s250 + $0x30] sm:$0xff]
        %v261 = vld [vmem:[%s250 + $0x38] sm:$0xff]
        %v262 = vld [vmem:[%s250 + $0x40] sm:$0xff]
        %v263 = vld [vmem:[%s250 + $0x48] sm:$0xff]
        %v264 = vld [vmem:[%s250 + $0x50] sm:$0xff]
        %v265 = vld [vmem:[%s250 + $0x58] sm:$0xff]
        %v266 = vld [vmem:[%s250 + $0x60] sm:$0xff]
        %v267 = vld [vmem:[%s250 + $0x68] sm:$0xff]
        %v268 = vld [vmem:[%s250 + $0x70] sm:$0xff]
        %v269 = vld [vmem:[%s250 + $0x78] sm:$0xff]
        %v270 = vld [vmem:[%s250 + $0x80] sm:$0xff]
        %v271 = vld [vmem:[%s250 + $0x88] sm:$0xff]
        %v272 = vld [vmem:[%s250 + $0x90] sm:$0xff]
        %v273 = vld [vmem:[%s250 + $0x98] sm:$0xff]
        %v274 = vld [vmem:[%s250 + $0xa0] sm:$0xff]
        %v275 = vld [vmem:[%s250 + $0xa8] sm:$0xff]
        %v276 = vld [vmem:[%s250 + $0xb0] sm:$0xff]
        %v277 = vld [vmem:[%s250 + $0xb8] sm:$0xff]
        %v278 = vld [vmem:[%s250 + $0xc0] sm:$0xff]
        %v279 = vld [vmem:[%s250 + $0xc8] sm:$0xff]
        %v280 = vld [vmem:[%s250 + $0xd0] sm:$0xff]
        %v281 = vld [vmem:[%s250 + $0xd8] sm:$0xff]
        %v282 = vld [vmem:[%s250 + $0xe0] sm:$0xff]
        %v283 = vld [vmem:[%s250 + $0xe8] sm:$0xff]
        %v284 = vld [vmem:[%s250 + $0xf0] sm:$0xff]
        %v285 = vld [vmem:[%s250 + $0xf8] sm:$0xff]
        %v286 = vpack.c.bf16 %v255, %v254
        %v287 = vpack.c.bf16 %v257, %v256
        %v288 = vpack.c.bf16 %v259, %v258
        %v289 = vpack.c.bf16 %v261, %v260
        %v290 = vpack.c.bf16 %v263, %v262
        %v291 = vpack.c.bf16 %v265, %v264
        %v292 = vpack.c.bf16 %v267, %v266
        %v293 = vpack.c.bf16 %v269, %v268
        %v294 = vpack.c.bf16 %v271, %v270
        %v295 = vpack.c.bf16 %v273, %v272
        %v296 = vpack.c.bf16 %v275, %v274
        %v297 = vpack.c.bf16 %v277, %v276
        %v298 = vpack.c.bf16 %v279, %v278
        %v299 = vpack.c.bf16 %v281, %v280
        %v300 = vpack.c.bf16 %v283, %v282
        %v301 = vpack.c.bf16 %v285, %v284
        %v302 = vld [vmem:[%s1] sm:$0xf]
        %v303 = vld [vmem:[%s1 + $0x4] sm:$0xf]
        %v304 = vld [vmem:[%s1 + $0x8] sm:$0xf]
        %v305 = vld [vmem:[%s1 + $0xc] sm:$0xf]
        %v306 = vld [vmem:[%s1 + $0x10] sm:$0xf]
        %v307 = vld [vmem:[%s1 + $0x14] sm:$0xf]
        %v308 = vld [vmem:[%s1 + $0x18] sm:$0xf]
        %v309 = vld [vmem:[%s1 + $0x1c] sm:$0xf]
        %v310 = vld [vmem:[%s5] sm:$0xff]
        %v311 = vld [vmem:[%s5 + $0x8] sm:$0xff]
        %v312 = vld [vmem:[%s5 + $0x10] sm:$0xff]
        %v313 = vld [vmem:[%s5 + $0x18] sm:$0xff]
        %v314 = vld [vmem:[%s5 + $0x20] sm:$0xff]
        %v315 = vld [vmem:[%s5 + $0x28] sm:$0xff]
        %v316 = vld [vmem:[%s5 + $0x30] sm:$0xff]
        %v317 = vld [vmem:[%s5 + $0x38] sm:$0xff]
        %319 = vset.pattern.permute.xlu0 0
        %320 = vperm.xlu0 %319, %v310
        %v321 = vpop.permute.xlu0 %320
        %324 = vset.pattern.permute.xlu0 0
        %325 = vperm.xlu0 %324, %v311
        %v326 = vpop.permute.xlu0 %325
        %329 = vset.pattern.permute.xlu0 0
        %330 = vperm.xlu0 %329, %v312
        %v331 = vpop.permute.xlu0 %330
        %334 = vset.pattern.permute.xlu0 0
        %335 = vperm.xlu0 %334, %v313
        %v336 = vpop.permute.xlu0 %335
        %339 = vset.pattern.permute.xlu0 0
        %340 = vperm.xlu0 %339, %v314
        %v341 = vpop.permute.xlu0 %340
        %344 = vset.pattern.permute.xlu0 0
        %345 = vperm.xlu0 %344, %v315
        %v346 = vpop.permute.xlu0 %345
        %349 = vset.pattern.permute.xlu0 0
        %350 = vperm.xlu0 %349, %v316
        %v351 = vpop.permute.xlu0 %350
        %354 = vset.pattern.permute.xlu0 0
        %355 = vperm.xlu0 %354, %v317
        %v356 = vpop.permute.xlu0 %355
        %v366 = vunpack.c.l.b16 %v302
        %v367 = vunpack.c.l.b16 %v303
        %v368 = vunpack.c.l.b16 %v304
        %v369 = vunpack.c.l.b16 %v305
        %v370 = vunpack.c.l.b16 %v306
        %v371 = vunpack.c.l.b16 %v307
        %v372 = vunpack.c.l.b16 %v308
        %v373 = vunpack.c.l.b16 %v309
        %v374 = vpack.c.b16 %v367, %v366
        %v375 = vpack.c.b16 %v369, %v368
        %v376 = vpack.c.b16 %v371, %v370
        %v377 = vpack.c.b16 %v373, %v372
        %vm378 = vcmask 261120
        %v380 = vsel %vm378, %v374, 0
        %v383 = vsel %vm378, %v375, 0
        %v386 = vsel %vm378, %v376, 0
        %v389 = vsel %vm378, %v377, 0
        %v392 = vsel %vm378, %v286, 0
        %v395 = vsel %vm378, %v287, 0
        %v398 = vsel %vm378, %v288, 0
        %v401 = vsel %vm378, %v289, 0
        %v404 = vsel %vm378, %v290, 0
        %v407 = vsel %vm378, %v291, 0
        %v410 = vsel %vm378, %v292, 0
        %v413 = vsel %vm378, %v293, 0
        %v416 = vsel %vm378, %v294, 0
        %v419 = vsel %vm378, %v295, 0
        %v422 = vsel %vm378, %v296, 0
        %v425 = vsel %vm378, %v297, 0
        %v428 = vsel %vm378, %v298, 0
        %v431 = vsel %vm378, %v299, 0
        %v434 = vsel %vm378, %v300, 0
        %v437 = vsel %vm378, %v301, 0
        %439 = vmatprep.subr.bf16.mxu0 0
        %440 = vmatpush1.bf16.xpose.msra.mxu0 %v392
        %441 = vmatprep.subr.bf16.mxu0 0
        %442 = vmatpush1.bf16.xpose.msra.mxu0 %v395
        %443 = vmatprep.subr.bf16.mxu0 0
        %444 = vmatpush1.bf16.xpose.msra.mxu0 %v398
        %445 = vmatprep.subr.bf16.mxu0 0
        %446 = vmatpush1.bf16.xpose.msra.mxu0 %v401
        %447 = vmatprep.subr.bf16.mxu0 0
        %448 = vmatpush1.bf16.xpose.msra.mxu0 %v404
        %449 = vmatprep.subr.bf16.mxu0 0
        %450 = vmatpush1.bf16.xpose.msra.mxu0 %v407
        %451 = vmatprep.subr.bf16.mxu0 0
        %452 = vmatpush1.bf16.xpose.msra.mxu0 %v410
        %453 = vmatprep.subr.bf16.mxu0 0
        %454 = vmatpush1.bf16.xpose.msra.mxu0 %v413
        %455 = vmatprep.subr.bf16.mxu0 0
        %456 = vmatpush1.bf16.xpose.msra.mxu0 %v416
        %457 = vmatprep.subr.bf16.mxu0 0
        %458 = vmatpush1.bf16.xpose.msra.mxu0 %v419
        %459 = vmatprep.subr.bf16.mxu0 0
        %460 = vmatpush1.bf16.xpose.msra.mxu0 %v422
        %461 = vmatprep.subr.bf16.mxu0 0
        %462 = vmatpush1.bf16.xpose.msra.mxu0 %v425
        %463 = vmatprep.subr.bf16.mxu0 0
        %464 = vmatpush1.bf16.xpose.msra.mxu0 %v428
        %465 = vmatprep.subr.bf16.mxu0 0
        %466 = vmatpush1.bf16.xpose.msra.mxu0 %v431
        %467 = vmatprep.subr.bf16.mxu0 0
        %468 = vmatpush1.bf16.xpose.msra.mxu0 %v434
        %469 = vmatprep.subr.bf16.mxu0 0
        %470 = vmatpush1.bf16.xpose.msra.mxu0 %v437
        %471 = vmatprep.mubr.bf16.mxu0 0
        %472 = vmatmul.mubr.bf16.gmra.mrb[0].mxu0 %v380
        %v473 = vpop.f32.mrb[0].mxu0
        %v474 = vadd.f32 %v321, %v473
        %v475 = vpop.f32.mrb[0].mxu0
        %v476 = vadd.f32 %v321, %v475
        %v477 = vpop.f32.mrb[0].mxu0
        %v478 = vadd.f32 %v326, %v477
        %v479 = vpop.f32.mrb[0].mxu0
        %v480 = vadd.f32 %v326, %v479
        %481 = vmatprep.mubr.bf16.mxu0 0
        %482 = vmatmul.mubr.bf16.gmra.mrb[0].mxu0 %v383
        %v483 = vpop.f32.mrb[0].mxu0
        %v484 = vadd.f32 %v331, %v483
        %v485 = vpop.f32.mrb[0].mxu0
        %v486 = vadd.f32 %v331, %v485
        %v487 = vpop.f32.mrb[0].mxu0
        %v488 = vadd.f32 %v336, %v487
        %v489 = vpop.f32.mrb[0].mxu0
        %v490 = vadd.f32 %v336, %v489
        %491 = vmatprep.mubr.bf16.mxu0 0
        %492 = vmatmul.mubr.bf16.gmra.mrb[0].mxu0 %v386
        %v493 = vpop.f32.mrb[0].mxu0
        %v494 = vadd.f32 %v341, %v493
        %v495 = vpop.f32.mrb[0].mxu0
        %v496 = vadd.f32 %v341, %v495
        %v497 = vpop.f32.mrb[0].mxu0
        %v498 = vadd.f32 %v346, %v497
        %v499 = vpop.f32.mrb[0].mxu0
        %v500 = vadd.f32 %v346, %v499
        %501 = vmatprep.mubr.bf16.mxu0 0
        %502 = vmatmul.mubr.bf16.gmra.mrb[0].mxu0 %v389
        %v503 = vpop.f32.mrb[0].mxu0
        %v504 = vadd.f32 %v351, %v503
        %v505 = vpop.f32.mrb[0].mxu0
        %v506 = vadd.f32 %v351, %v505
        %v507 = vpop.f32.mrb[0].mxu0
        %v508 = vadd.f32 %v356, %v507
        %v509 = vpop.f32.mrb[0].mxu0
        %v510 = vadd.f32 %v356, %v509
        %511 = vdwg.mxu0
        %v512 = vmul.f32 %v474, 0.01
        %v513 = vmul.f32 %v476, 0.01
        %v514 = vmul.f32 %v478, 0.01
        %v515 = vmul.f32 %v480, 0.01
        %v516 = vmul.f32 %v484, 0.01
        %v517 = vmul.f32 %v486, 0.01
        %v518 = vmul.f32 %v488, 0.01
        %v519 = vmul.f32 %v490, 0.01
        %v520 = vmul.f32 %v494, 0.01
        %v521 = vmul.f32 %v496, 0.01
        %v522 = vmul.f32 %v498, 0.01
        %v523 = vmul.f32 %v500, 0.01
        %v524 = vmul.f32 %v504, 0.01
        %v525 = vmul.f32 %v506, 0.01
        %v526 = vmul.f32 %v508, 0.01
        %v527 = vmul.f32 %v510, 0.01
        %v528 = vmax.f32 %v474, %v512
        %v529 = vmax.f32 %v476, %v513
        %v530 = vmax.f32 %v478, %v514
        %v531 = vmax.f32 %v480, %v515
        %v532 = vmax.f32 %v484, %v516
        %v533 = vmax.f32 %v486, %v517
        %v534 = vmax.f32 %v488, %v518
        %v535 = vmax.f32 %v490, %v519
        %v536 = vmax.f32 %v494, %v520
        %v537 = vmax.f32 %v496, %v521
        %v538 = vmax.f32 %v498, %v522
        %v539 = vmax.f32 %v500, %v523
        %v540 = vmax.f32 %v504, %v524
        %v541 = vmax.f32 %v506, %v525
        %v542 = vmax.f32 %v508, %v526
        %v543 = vmax.f32 %v510, %v527
        %v544 = vld [vmem:[%s2] sm:$0xf]
        %v545 = vld [vmem:[%s2 + $0x4] sm:$0xf]
        %v546 = vld [vmem:[%s2 + $0x8] sm:$0xf]
        %v547 = vld [vmem:[%s2 + $0xc] sm:$0xf]
        %v548 = vpack.c.bf16 %v530, %v528
        %v549 = vpack.c.bf16 %v531, %v529
        %v550 = vpack.c.bf16 %v534, %v532
        %v551 = vpack.c.bf16 %v535, %v533
        %v552 = vpack.c.bf16 %v538, %v536
        %v553 = vpack.c.bf16 %v539, %v537
        %v554 = vpack.c.bf16 %v542, %v540
        %v555 = vpack.c.bf16 %v543, %v541
        %v556 = vld [vmem:[%s5] sm:$0xff]
        %v557 = vld [vmem:[%s5 + $0x8] sm:$0xff]
        %v558 = vld [vmem:[%s5 + $0x10] sm:$0xff]
        %v559 = vld [vmem:[%s5 + $0x18] sm:$0xff]
        %561 = vset.pattern.permute.xlu0 1
        %562 = vperm.xlu0 %561, %v556
        %v563 = vpop.permute.xlu0 %562
        %566 = vset.pattern.permute.xlu0 1
        %567 = vperm.xlu0 %566, %v557
        %v568 = vpop.permute.xlu0 %567
        %571 = vset.pattern.permute.xlu0 1
        %572 = vperm.xlu0 %571, %v558
        %v573 = vpop.permute.xlu0 %572
        %576 = vset.pattern.permute.xlu0 1
        %577 = vperm.xlu0 %576, %v559
        %v578 = vpop.permute.xlu0 %577
        %v584 = vunpack.c.l.b16 %v544
        %v585 = vunpack.c.l.b16 %v545
        %v586 = vunpack.c.l.b16 %v546
        %v587 = vunpack.c.l.b16 %v547
        %v588 = vpack.c.b16 %v585, %v584
        %v589 = vpack.c.b16 %v587, %v586
        %vm590 = vcmask 523264
        %v592 = vsel %vm590, %v588, 0
        %v595 = vsel %vm590, %v589, 0
        %597 = vmatprep.subr.bf16.mxu0 %v549
        %598 = vmatpush1.bf16.msra.mxu0 %v548
        %599 = vmatprep.subr.bf16.mxu0 %v551
        %600 = vmatpush1.bf16.msra.mxu0 %v550
        %601 = vmatprep.subr.bf16.mxu0 %v553
        %602 = vmatpush1.bf16.msra.mxu0 %v552
        %603 = vmatprep.subr.bf16.mxu0 %v555
        %604 = vmatpush1.bf16.msra.mxu0 %v554
        %605 = vmatprep.subr.bf16.mxu0 0
        %606 = vmatpush1.bf16.msra.mxu0 0
        %607 = vmatprep.subr.bf16.mxu0 0
        %608 = vmatpush1.bf16.msra.mxu0 0
        %609 = vmatprep.subr.bf16.mxu0 0
        %610 = vmatpush1.bf16.msra.mxu0 0
        %611 = vmatprep.subr.bf16.mxu0 0
        %612 = vmatpush1.bf16.msra.mxu0 0
        %613 = vmatprep.subr.bf16.mxu0 0
        %614 = vmatpush1.bf16.msra.mxu0 0
        %615 = vmatprep.subr.bf16.mxu0 0
        %616 = vmatpush1.bf16.msra.mxu0 0
        %617 = vmatprep.subr.bf16.mxu0 0
        %618 = vmatpush1.bf16.msra.mxu0 0
        %619 = vmatprep.subr.bf16.mxu0 0
        %620 = vmatpush1.bf16.msra.mxu0 0
        %621 = vmatprep.subr.bf16.mxu0 0
        %622 = vmatpush1.bf16.msra.mxu0 0
        %623 = vmatprep.subr.bf16.mxu0 0
        %624 = vmatpush1.bf16.msra.mxu0 0
        %625 = vmatprep.subr.bf16.mxu0 0
        %626 = vmatpush1.bf16.msra.mxu0 0
        %627 = vmatprep.subr.bf16.mxu0 0
        %628 = vmatpush1.bf16.msra.mxu0 0
        %629 = vmatprep.mubr.bf16.mxu0 0
        %630 = vmatmul.mubr.bf16.gmra.mrb[0].mxu0 %v592
        %v631 = vpop.f32.mrb[0].mxu0
        %v632 = vadd.f32 %v563, %v631
        %v633 = vpop.f32.mrb[0].mxu0
        %v634 = vadd.f32 %v563, %v633
        %v635 = vpop.f32.mrb[0].mxu0
        %v636 = vadd.f32 %v568, %v635
        %v637 = vpop.f32.mrb[0].mxu0
        %v638 = vadd.f32 %v568, %v637
        %639 = vmatprep.mubr.bf16.mxu0 0
        %640 = vmatmul.mubr.bf16.gmra.mrb[0].mxu0 %v595
        %v641 = vpop.f32.mrb[0].mxu0
        %v642 = vadd.f32 %v573, %v641
        %v643 = vpop.f32.mrb[0].mxu0
        %v644 = vadd.f32 %v573, %v643
        %v645 = vpop.f32.mrb[0].mxu0
        %v646 = vadd.f32 %v578, %v645
        %v647 = vpop.f32.mrb[0].mxu0
        %v648 = vadd.f32 %v578, %v647
        %649 = vdwg.mxu0
        %v650 = vmul.f32 %v632, 0.01
        %v651 = vmul.f32 %v634, 0.01
        %v652 = vmul.f32 %v636, 0.01
        %v653 = vmul.f32 %v638, 0.01
        %v654 = vmul.f32 %v642, 0.01
        %v655 = vmul.f32 %v644, 0.01
        %v656 = vmul.f32 %v646, 0.01
        %v657 = vmul.f32 %v648, 0.01
        %v658 = vmax.f32 %v632, %v650
        %v659 = vmax.f32 %v634, %v651
        %v660 = vmax.f32 %v636, %v652
        %v661 = vmax.f32 %v638, %v653
        %v662 = vmax.f32 %v642, %v654
        %v663 = vmax.f32 %v644, %v655
        %v664 = vmax.f32 %v646, %v656
        %v665 = vmax.f32 %v648, %v657
        %v666 = vld [vmem:[%s3] sm:$0xf]
        %v667 = vld [vmem:[%s3 + $0x4] sm:$0xf]
        %v668 = vld [vmem:[%s3 + $0x8] sm:$0xf]
        %v669 = vld [vmem:[%s3 + $0xc] sm:$0xf]
        %v670 = vpack.c.bf16 %v660, %v658
        %v671 = vpack.c.bf16 %v661, %v659
        %v672 = vpack.c.bf16 %v664, %v662
        %v673 = vpack.c.bf16 %v665, %v663
        %674 = vset.pattern.permute.xlu0 2
        %675 = vperm.xlu0 %674, %v556
        %v676 = vpop.permute.xlu0 %675
        %678 = vset.pattern.permute.xlu0 2
        %679 = vperm.xlu0 %678, %v557
        %v680 = vpop.permute.xlu0 %679
        %682 = vset.pattern.permute.xlu0 2
        %683 = vperm.xlu0 %682, %v558
        %v684 = vpop.permute.xlu0 %683
        %686 = vset.pattern.permute.xlu0 2
        %687 = vperm.xlu0 %686, %v559
        %v688 = vpop.permute.xlu0 %687
        %v694 = vunpack.c.l.b16 %v666
        %v695 = vunpack.c.l.b16 %v667
        %v696 = vunpack.c.l.b16 %v668
        %v697 = vunpack.c.l.b16 %v669
        %v698 = vpack.c.b16 %v695, %v694
        %v699 = vpack.c.b16 %v697, %v696
        %v701 = vsel %vm378, %v698, 0
        %v704 = vsel %vm378, %v699, 0
        %706 = vmatprep.subr.bf16.mxu0 %v671
        %707 = vmatpush1.bf16.msra.mxu0 %v670
        %708 = vmatprep.subr.bf16.mxu0 %v673
        %709 = vmatpush1.bf16.msra.mxu0 %v672
        %710 = vmatprep.subr.bf16.mxu0 0
        %711 = vmatpush1.bf16.msra.mxu0 0
        %712 = vmatprep.subr.bf16.mxu0 0
        %713 = vmatpush1.bf16.msra.mxu0 0
        %714 = vmatprep.subr.bf16.mxu0 0
        %715 = vmatpush1.bf16.msra.mxu0 0
        %716 = vmatprep.subr.bf16.mxu0 0
        %717 = vmatpush1.bf16.msra.mxu0 0
        %718 = vmatprep.subr.bf16.mxu0 0
        %719 = vmatpush1.bf16.msra.mxu0 0
        %720 = vmatprep.subr.bf16.mxu0 0
        %721 = vmatpush1.bf16.msra.mxu0 0
        %722 = vmatprep.subr.bf16.mxu0 0
        %723 = vmatpush1.bf16.msra.mxu0 0
        %724 = vmatprep.subr.bf16.mxu0 0
        %725 = vmatpush1.bf16.msra.mxu0 0
        %726 = vmatprep.subr.bf16.mxu0 0
        %727 = vmatpush1.bf16.msra.mxu0 0
        %728 = vmatprep.subr.bf16.mxu0 0
        %729 = vmatpush1.bf16.msra.mxu0 0
        %730 = vmatprep.subr.bf16.mxu0 0
        %731 = vmatpush1.bf16.msra.mxu0 0
        %732 = vmatprep.subr.bf16.mxu0 0
        %733 = vmatpush1.bf16.msra.mxu0 0
        %734 = vmatprep.subr.bf16.mxu0 0
        %735 = vmatpush1.bf16.msra.mxu0 0
        %736 = vmatprep.subr.bf16.mxu0 0
        %737 = vmatpush1.bf16.msra.mxu0 0
        %738 = vmatprep.mubr.bf16.mxu0 0
        %739 = vmatmul.mubr.bf16.gmra.mrb[0].mxu0 %v701
        %v740 = vpop.f32.mrb[0].mxu0
        %v741 = vadd.f32 %v676, %v740
        %v742 = vpop.f32.mrb[0].mxu0
        %v743 = vadd.f32 %v676, %v742
        %v744 = vpop.f32.mrb[0].mxu0
        %v745 = vadd.f32 %v680, %v744
        %v746 = vpop.f32.mrb[0].mxu0
        %v747 = vadd.f32 %v680, %v746
        %748 = vmatprep.mubr.bf16.mxu0 0
        %749 = vmatmul.mubr.bf16.gmra.mrb[0].mxu0 %v704
        %v750 = vpop.f32.mrb[0].mxu0
        %v751 = vadd.f32 %v684, %v750
        %v752 = vpop.f32.mrb[0].mxu0
        %v753 = vadd.f32 %v684, %v752
        %v754 = vpop.f32.mrb[0].mxu0
        %v755 = vadd.f32 %v688, %v754
        %v756 = vpop.f32.mrb[0].mxu0
        %v757 = vadd.f32 %v688, %v756
        %758 = vdwg.mxu0
        %v759 = vmul.f32 %v741, 0.01
        %v760 = vmul.f32 %v743, 0.01
        %v761 = vmul.f32 %v745, 0.01
        %v762 = vmul.f32 %v747, 0.01
        %v763 = vmul.f32 %v751, 0.01
        %v764 = vmul.f32 %v753, 0.01
        %v765 = vmul.f32 %v755, 0.01
        %v766 = vmul.f32 %v757, 0.01
        %v767 = vmax.f32 %v741, %v759
        %v768 = vmax.f32 %v743, %v760
        %v769 = vmax.f32 %v745, %v761
        %v770 = vmax.f32 %v747, %v762
        %v771 = vmax.f32 %v751, %v763
        %v772 = vmax.f32 %v753, %v764
        %v773 = vmax.f32 %v755, %v765
        %v774 = vmax.f32 %v757, %v766
        %s775 = scalar_lea.vmem %s3, 16
        %v776 = vld [vmem:[%s775] sm:$0xf]
        %v777 = vld [vmem:[%s775 + $0x4] sm:$0xf]
        %v778 = vld [vmem:[%s775 + $0x8] sm:$0xf]
        %v779 = vld [vmem:[%s775 + $0xc] sm:$0xf]
        %v780 = vpack.c.bf16 %v769, %v767
        %v781 = vpack.c.bf16 %v770, %v768
        %v782 = vpack.c.bf16 %v773, %v771
        %v783 = vpack.c.bf16 %v774, %v772
        %784 = vset.pattern.permute.xlu0 3
        %785 = vperm.xlu0 %784, %v556
        %v786 = vpop.permute.xlu0 %785
        %788 = vset.pattern.permute.xlu0 3
        %789 = vperm.xlu0 %788, %v557
        %v790 = vpop.permute.xlu0 %789
        %792 = vset.pattern.permute.xlu0 3
        %793 = vperm.xlu0 %792, %v558
        %v794 = vpop.permute.xlu0 %793
        %796 = vset.pattern.permute.xlu0 3
        %797 = vperm.xlu0 %796, %v559
        %v798 = vpop.permute.xlu0 %797
        %v804 = vunpack.c.l.b16 %v776
        %v805 = vunpack.c.l.b16 %v777
        %v806 = vunpack.c.l.b16 %v778
        %v807 = vunpack.c.l.b16 %v779
        %v808 = vpack.c.b16 %v805, %v804
        %v809 = vpack.c.b16 %v807, %v806
        %v811 = vsel %vm378, %v808, 0
        %v814 = vsel %vm378, %v809, 0
        %816 = vmatprep.subr.bf16.mxu0 %v781
        %817 = vmatpush1.bf16.msra.mxu0 %v780
        %818 = vmatprep.subr.bf16.mxu0 %v783
        %819 = vmatpush1.bf16.msra.mxu0 %v782
        %820 = vmatprep.subr.bf16.mxu0 0
        %821 = vmatpush1.bf16.msra.mxu0 0
        %822 = vmatprep.subr.bf16.mxu0 0
        %823 = vmatpush1.bf16.msra.mxu0 0
        %824 = vmatprep.subr.bf16.mxu0 0
        %825 = vmatpush1.bf16.msra.mxu0 0
        %826 = vmatprep.subr.bf16.mxu0 0
        %827 = vmatpush1.bf16.msra.mxu0 0
        %828 = vmatprep.subr.bf16.mxu0 0
        %829 = vmatpush1.bf16.msra.mxu0 0
        %830 = vmatprep.subr.bf16.mxu0 0
        %831 = vmatpush1.bf16.msra.mxu0 0
        %832 = vmatprep.subr.bf16.mxu0 0
        %833 = vmatpush1.bf16.msra.mxu0 0
        %834 = vmatprep.subr.bf16.mxu0 0
        %835 = vmatpush1.bf16.msra.mxu0 0
        %836 = vmatprep.subr.bf16.mxu0 0
        %837 = vmatpush1.bf16.msra.mxu0 0
        %838 = vmatprep.subr.bf16.mxu0 0
        %839 = vmatpush1.bf16.msra.mxu0 0
        %840 = vmatprep.subr.bf16.mxu0 0
        %841 = vmatpush1.bf16.msra.mxu0 0
        %842 = vmatprep.subr.bf16.mxu0 0
        %843 = vmatpush1.bf16.msra.mxu0 0
        %844 = vmatprep.subr.bf16.mxu0 0
        %845 = vmatpush1.bf16.msra.mxu0 0
        %846 = vmatprep.subr.bf16.mxu0 0
        %847 = vmatpush1.bf16.msra.mxu0 0
        %848 = vmatprep.mubr.bf16.mxu0 0
        %849 = vmatmul.mubr.bf16.gmra.mrb[0].mxu0 %v811
        %v850 = vpop.f32.mrb[0].mxu0
        %v851 = vadd.f32 %v786, %v850
        %v852 = vpop.f32.mrb[0].mxu0
        %v853 = vadd.f32 %v786, %v852
        %v854 = vpop.f32.mrb[0].mxu0
        %v855 = vadd.f32 %v790, %v854
        %v856 = vpop.f32.mrb[0].mxu0
        %v857 = vadd.f32 %v790, %v856
        %858 = vmatprep.mubr.bf16.mxu0 0
        %859 = vmatmul.mubr.bf16.gmra.mrb[0].mxu0 %v814
        %v860 = vpop.f32.mrb[0].mxu0
        %v861 = vadd.f32 %v794, %v860
        %v862 = vpop.f32.mrb[0].mxu0
        %v863 = vadd.f32 %v794, %v862
        %v864 = vpop.f32.mrb[0].mxu0
        %v865 = vadd.f32 %v798, %v864
        %v866 = vpop.f32.mrb[0].mxu0
        %v867 = vadd.f32 %v798, %v866
        %868 = vdwg.mxu0
        %v869 = vmul.f32 %v851, 0.01
        %v870 = vmul.f32 %v853, 0.01
        %v871 = vmul.f32 %v855, 0.01
        %v872 = vmul.f32 %v857, 0.01
        %v873 = vmul.f32 %v861, 0.01
        %v874 = vmul.f32 %v863, 0.01
        %v875 = vmul.f32 %v865, 0.01
        %v876 = vmul.f32 %v867, 0.01
        %v877 = vmax.f32 %v851, %v869
        %v878 = vmax.f32 %v853, %v870
        %v879 = vmax.f32 %v855, %v871
        %v880 = vmax.f32 %v857, %v872
        %v881 = vmax.f32 %v861, %v873
        %v882 = vmax.f32 %v863, %v874
        %v883 = vmax.f32 %v865, %v875
        %v884 = vmax.f32 %v867, %v876
        %s885 = scalar_lea.vmem %s3, 32
        %v886 = vld [vmem:[%s885] sm:$0xf]
        %v887 = vld [vmem:[%s885 + $0x4] sm:$0xf]
        %v888 = vld [vmem:[%s885 + $0x8] sm:$0xf]
        %v889 = vld [vmem:[%s885 + $0xc] sm:$0xf]
        %v890 = vpack.c.bf16 %v879, %v877
        %v891 = vpack.c.bf16 %v880, %v878
        %v892 = vpack.c.bf16 %v883, %v881
        %v893 = vpack.c.bf16 %v884, %v882
        %894 = vset.pattern.permute.xlu0 4
        %895 = vperm.xlu0 %894, %v556
        %v896 = vpop.permute.xlu0 %895
        %898 = vset.pattern.permute.xlu0 4
        %899 = vperm.xlu0 %898, %v557
        %v900 = vpop.permute.xlu0 %899
        %902 = vset.pattern.permute.xlu0 4
        %903 = vperm.xlu0 %902, %v558
        %v904 = vpop.permute.xlu0 %903
        %906 = vset.pattern.permute.xlu0 4
        %907 = vperm.xlu0 %906, %v559
        %v908 = vpop.permute.xlu0 %907
        %v914 = vunpack.c.l.b16 %v886
        %v915 = vunpack.c.l.b16 %v887
        %v916 = vunpack.c.l.b16 %v888
        %v917 = vunpack.c.l.b16 %v889
        %v918 = vpack.c.b16 %v915, %v914
        %v919 = vpack.c.b16 %v917, %v916
        %v921 = vsel %vm378, %v918, 0
        %v924 = vsel %vm378, %v919, 0
        %926 = vmatprep.subr.bf16.mxu0 %v891
        %927 = vmatpush1.bf16.msra.mxu0 %v890
        %928 = vmatprep.subr.bf16.mxu0 %v893
        %929 = vmatpush1.bf16.msra.mxu0 %v892
        %930 = vmatprep.subr.bf16.mxu0 0
        %931 = vmatpush1.bf16.msra.mxu0 0
        %932 = vmatprep.subr.bf16.mxu0 0
        %933 = vmatpush1.bf16.msra.mxu0 0
        %934 = vmatprep.subr.bf16.mxu0 0
        %935 = vmatpush1.bf16.msra.mxu0 0
        %936 = vmatprep.subr.bf16.mxu0 0
        %937 = vmatpush1.bf16.msra.mxu0 0
        %938 = vmatprep.subr.bf16.mxu0 0
        %939 = vmatpush1.bf16.msra.mxu0 0
        %940 = vmatprep.subr.bf16.mxu0 0
        %941 = vmatpush1.bf16.msra.mxu0 0
        %942 = vmatprep.subr.bf16.mxu0 0
        %943 = vmatpush1.bf16.msra.mxu0 0
        %944 = vmatprep.subr.bf16.mxu0 0
        %945 = vmatpush1.bf16.msra.mxu0 0
        %946 = vmatprep.subr.bf16.mxu0 0
        %947 = vmatpush1.bf16.msra.mxu0 0
        %948 = vmatprep.subr.bf16.mxu0 0
        %949 = vmatpush1.bf16.msra.mxu0 0
        %950 = vmatprep.subr.bf16.mxu0 0
        %951 = vmatpush1.bf16.msra.mxu0 0
        %952 = vmatprep.subr.bf16.mxu0 0
        %953 = vmatpush1.bf16.msra.mxu0 0
        %954 = vmatprep.subr.bf16.mxu0 0
        %955 = vmatpush1.bf16.msra.mxu0 0
        %956 = vmatprep.subr.bf16.mxu0 0
        %957 = vmatpush1.bf16.msra.mxu0 0
        %958 = vmatprep.mubr.bf16.mxu0 0
        %959 = vmatmul.mubr.bf16.gmra.mrb[0].mxu0 %v921
        %v960 = vpop.f32.mrb[0].mxu0
        %v961 = vadd.f32 %v896, %v960
        %v962 = vpop.f32.mrb[0].mxu0
        %v963 = vadd.f32 %v896, %v962
        %v964 = vpop.f32.mrb[0].mxu0
        %v965 = vadd.f32 %v900, %v964
        %v966 = vpop.f32.mrb[0].mxu0
        %v967 = vadd.f32 %v900, %v966
        %968 = vmatprep.mubr.bf16.mxu0 0
        %969 = vmatmul.mubr.bf16.gmra.mrb[0].mxu0 %v924
        %v970 = vpop.f32.mrb[0].mxu0
        %v971 = vadd.f32 %v904, %v970
        %v972 = vpop.f32.mrb[0].mxu0
        %v973 = vadd.f32 %v904, %v972
        %v974 = vpop.f32.mrb[0].mxu0
        %v975 = vadd.f32 %v908, %v974
        %v976 = vpop.f32.mrb[0].mxu0
        %v977 = vadd.f32 %v908, %v976
        %978 = vdwg.mxu0
        %v979 = vmul.f32 %v961, 0.01
        %v980 = vmul.f32 %v963, 0.01
        %v981 = vmul.f32 %v965, 0.01
        %v982 = vmul.f32 %v967, 0.01
        %v983 = vmul.f32 %v971, 0.01
        %v984 = vmul.f32 %v973, 0.01
        %v985 = vmul.f32 %v975, 0.01
        %v986 = vmul.f32 %v977, 0.01
        %v987 = vmax.f32 %v961, %v979
        %v988 = vmax.f32 %v963, %v980
        %v989 = vmax.f32 %v965, %v981
        %v990 = vmax.f32 %v967, %v982
        %v991 = vmax.f32 %v971, %v983
        %v992 = vmax.f32 %v973, %v984
        %v993 = vmax.f32 %v975, %v985
        %v994 = vmax.f32 %v977, %v986
        %s995 = scalar_lea.vmem %s3, 48
        %v996 = vld [vmem:[%s995] sm:$0xf]
        %v997 = vld [vmem:[%s995 + $0x4] sm:$0xf]
        %v998 = vld [vmem:[%s995 + $0x8] sm:$0xf]
        %v999 = vld [vmem:[%s995 + $0xc] sm:$0xf]
        %v1000 = vpack.c.bf16 %v989, %v987
        %v1001 = vpack.c.bf16 %v990, %v988
        %v1002 = vpack.c.bf16 %v993, %v991
        %v1003 = vpack.c.bf16 %v994, %v992
        %1004 = vset.pattern.permute.xlu0 5
        %1005 = vperm.xlu0 %1004, %v556
        %v1006 = vpop.permute.xlu0 %1005
        %1008 = vset.pattern.permute.xlu0 5
        %1009 = vperm.xlu0 %1008, %v557
        %v1010 = vpop.permute.xlu0 %1009
        %1012 = vset.pattern.permute.xlu0 5
        %1013 = vperm.xlu0 %1012, %v558
        %v1014 = vpop.permute.xlu0 %1013
        %1016 = vset.pattern.permute.xlu0 5
        %1017 = vperm.xlu0 %1016, %v559
        %v1018 = vpop.permute.xlu0 %1017
        %v1024 = vunpack.c.l.b16 %v996
        %v1025 = vunpack.c.l.b16 %v997
        %v1026 = vunpack.c.l.b16 %v998
        %v1027 = vunpack.c.l.b16 %v999
        %v1028 = vpack.c.b16 %v1025, %v1024
        %v1029 = vpack.c.b16 %v1027, %v1026
        %v1031 = vsel %vm378, %v1028, 0
        %v1034 = vsel %vm378, %v1029, 0
        %1036 = vmatprep.subr.bf16.mxu0 %v1001
        %1037 = vmatpush1.bf16.msra.mxu0 %v1000
        %1038 = vmatprep.subr.bf16.mxu0 %v1003
        %1039 = vmatpush1.bf16.msra.mxu0 %v1002
        %1040 = vmatprep.subr.bf16.mxu0 0
        %1041 = vmatpush1.bf16.msra.mxu0 0
        %1042 = vmatprep.subr.bf16.mxu0 0
        %1043 = vmatpush1.bf16.msra.mxu0 0
        %1044 = vmatprep.subr.bf16.mxu0 0
        %1045 = vmatpush1.bf16.msra.mxu0 0
        %1046 = vmatprep.subr.bf16.mxu0 0
        %1047 = vmatpush1.bf16.msra.mxu0 0
        %1048 = vmatprep.subr.bf16.mxu0 0
        %1049 = vmatpush1.bf16.msra.mxu0 0
        %1050 = vmatprep.subr.bf16.mxu0 0
        %1051 = vmatpush1.bf16.msra.mxu0 0
        %1052 = vmatprep.subr.bf16.mxu0 0
        %1053 = vmatpush1.bf16.msra.mxu0 0
        %1054 = vmatprep.subr.bf16.mxu0 0
        %1055 = vmatpush1.bf16.msra.mxu0 0
        %1056 = vmatprep.subr.bf16.mxu0 0
        %1057 = vmatpush1.bf16.msra.mxu0 0
        %1058 = vmatprep.subr.bf16.mxu0 0
        %1059 = vmatpush1.bf16.msra.mxu0 0
        %1060 = vmatprep.subr.bf16.mxu0 0
        %1061 = vmatpush1.bf16.msra.mxu0 0
        %1062 = vmatprep.subr.bf16.mxu0 0
        %1063 = vmatpush1.bf16.msra.mxu0 0
        %1064 = vmatprep.subr.bf16.mxu0 0
        %1065 = vmatpush1.bf16.msra.mxu0 0
        %1066 = vmatprep.subr.bf16.mxu0 0
        %1067 = vmatpush1.bf16.msra.mxu0 0
        %1068 = vmatprep.mubr.bf16.mxu0 0
        %1069 = vmatmul.mubr.bf16.gmra.mrb[0].mxu0 %v1031
        %v1070 = vpop.f32.mrb[0].mxu0
        %v1071 = vadd.f32 %v1006, %v1070
        %v1072 = vpop.f32.mrb[0].mxu0
        %v1073 = vadd.f32 %v1006, %v1072
        %v1074 = vpop.f32.mrb[0].mxu0
        %v1075 = vadd.f32 %v1010, %v1074
        %v1076 = vpop.f32.mrb[0].mxu0
        %v1077 = vadd.f32 %v1010, %v1076
        %1078 = vmatprep.mubr.bf16.mxu0 0
        %1079 = vmatmul.mubr.bf16.gmra.mrb[0].mxu0 %v1034
        %v1080 = vpop.f32.mrb[0].mxu0
        %v1081 = vadd.f32 %v1014, %v1080
        %v1082 = vpop.f32.mrb[0].mxu0
        %v1083 = vadd.f32 %v1014, %v1082
        %v1084 = vpop.f32.mrb[0].mxu0
        %v1085 = vadd.f32 %v1018, %v1084
        %v1086 = vpop.f32.mrb[0].mxu0
        %v1087 = vadd.f32 %v1018, %v1086
        %1088 = vdwg.mxu0
        %v1089 = vmul.f32 %v1071, 0.01
        %v1090 = vmul.f32 %v1073, 0.01
        %v1091 = vmul.f32 %v1075, 0.01
        %v1092 = vmul.f32 %v1077, 0.01
        %v1093 = vmul.f32 %v1081, 0.01
        %v1094 = vmul.f32 %v1083, 0.01
        %v1095 = vmul.f32 %v1085, 0.01
        %v1096 = vmul.f32 %v1087, 0.01
        %v1097 = vmax.f32 %v1071, %v1089
        %v1098 = vmax.f32 %v1073, %v1090
        %v1099 = vmax.f32 %v1075, %v1091
        %v1100 = vmax.f32 %v1077, %v1092
        %v1101 = vmax.f32 %v1081, %v1093
        %v1102 = vmax.f32 %v1083, %v1094
        %v1103 = vmax.f32 %v1085, %v1095
        %v1104 = vmax.f32 %v1087, %v1096
        %v1105 = vld [vmem:[%s4] sm:$0x1]
        %v1106 = vpack.c.bf16 %v1099, %v1097
        %v1107 = vpack.c.bf16 %v1100, %v1098
        %v1108 = vpack.c.bf16 %v1103, %v1101
        %v1109 = vpack.c.bf16 %v1104, %v1102
        %v1110 = vld [vmem:[%s5] sm:$0x1]
        %1112 = vset.pattern.permute.xlu0 6
        %1113 = vperm.xlu0 %1112, %v1110
        %v1114 = vpop.permute.xlu0 %1113
        %v1117 = vsel %vm378, %v1105, 0
        %1119 = vmatprep.subr.bf16.mxu0 %v1107
        %1120 = vmatpush1.bf16.msra.mxu0 %v1106
        %1121 = vmatprep.subr.bf16.mxu0 %v1109
        %1122 = vmatpush1.bf16.msra.mxu0 %v1108
        %1123 = vmatprep.subr.bf16.mxu0 0
        %1124 = vmatpush1.bf16.msra.mxu0 0
        %1125 = vmatprep.subr.bf16.mxu0 0
        %1126 = vmatpush1.bf16.msra.mxu0 0
        %1127 = vmatprep.subr.bf16.mxu0 0
        %1128 = vmatpush1.bf16.msra.mxu0 0
        %1129 = vmatprep.subr.bf16.mxu0 0
        %1130 = vmatpush1.bf16.msra.mxu0 0
        %1131 = vmatprep.subr.bf16.mxu0 0
        %1132 = vmatpush1.bf16.msra.mxu0 0
        %1133 = vmatprep.subr.bf16.mxu0 0
        %1134 = vmatpush1.bf16.msra.mxu0 0
        %1135 = vmatprep.subr.bf16.mxu0 0
        %1136 = vmatpush1.bf16.msra.mxu0 0
        %1137 = vmatprep.subr.bf16.mxu0 0
        %1138 = vmatpush1.bf16.msra.mxu0 0
        %1139 = vmatprep.subr.bf16.mxu0 0
        %1140 = vmatpush1.bf16.msra.mxu0 0
        %1141 = vmatprep.subr.bf16.mxu0 0
        %1142 = vmatpush1.bf16.msra.mxu0 0
        %1143 = vmatprep.subr.bf16.mxu0 0
        %1144 = vmatpush1.bf16.msra.mxu0 0
        %1145 = vmatprep.subr.bf16.mxu0 0
        %1146 = vmatpush1.bf16.msra.mxu0 0
        %1147 = vmatprep.subr.bf16.mxu0 0
        %1148 = vmatpush1.bf16.msra.mxu0 0
        %1149 = vmatprep.subr.bf16.mxu0 0
        %1150 = vmatpush1.bf16.msra.mxu0 0
        %1151 = vmatprep.mubr.bf16.mxu0 0
        %1152 = vmatmul.mubr.bf16.gmra.mrb[0].mxu0 %v1117
        %v1153 = vpop.f32.mrb[0].mxu0
        %v1154 = vadd.f32 %v1114, %v1153
        %v1155 = vpop.f32.mrb[0].mxu0
        %v1156 = vadd.f32 %v1114, %v1155
        %v1157 = vpop.f32.mrb[0].mxu0
        %v1158 = vpop.f32.mrb[0].mxu0
        %1159 = vdwg.mxu0
        %v1160 = vmul.f32 %v1154, 0.5
        %v1161 = vmul.f32 %v1156, 0.5
        %v1162 = vtanh.pop %v1160
        %v1163 = vtanh.pop %v1161
        %v1164 = vmul.f32 %v1162, 0.5
        %v1165 = vmul.f32 %v1163, 0.5
        %v1166 = vadd.f32 %v1164, 0.5
        %v1167 = vadd.f32 %v1165, 0.5
        %v1170 = vcombine.low %v1166, %v1167
        %v1172 = vunpack.c.l.s4 1966171168
        %v1173 = vunpack.c.0.s8 %v1172
        %v1174 = vlaneseq
        %v1175 = vshrl.u32 %v1174, 7
        %v1176 = vsub.s32 %v1173, %v1175
        %v1177 = vrot.slane %v1170, %v1176
        %v1179 = vunpack.c.l.s4 1966171168
        %v1180 = vunpack.c.0.s8 %v1179
        %v1181 = vlaneseq
        %v1182 = vshrl.u32 %v1181, 7
        %v1183 = vsub.s32 %v1180, %v1182
        %v1184 = vrot.slane %v1177, %v1183
        %v1186 = vlaneseq
        %vm1187 = vcmp.ge.s32.totalorder %v1186, 0
        %vm1188 = vcmp.lt.s32.totalorder %v1186, 256
        %vm1189 = vmand %vm1187, %vm1188
        %1190 = vst.msk [vmem:[%s245] sm:$0x3] %vm1189, %v1184
        %s1191 = sand.u32 %s159, 1
        %s1192 = scalar_lea.sflag [#allocation3], %s1191
        %s1193 = sand.u32 %s159, 1
        %s1194 = smul.addr %s1193, 2
        %s1195 = scalar_lea.vmem [#allocation2], %s1194
        // Predicated region
        $region45: #{tpu_custom_call.1} parent=43 // pred_check
          %p1196 = pneg %p169
        $region46: #{tpu_custom_call.1} parent=43 // pred_check_branch
          %1198 = sbr.rel (%p1196) target = $region48
        $region47: #{tpu_custom_call.1} parent=43 // pred_region
          %s1199 = smul.u32 2, %s20
          %s1201 = ssub.s32 32, 32
          %1202 = vsyncadd %s1192, %s1201
          %s1203 = smul.addr %s1199, 16
          %s1204 = scalar_lea.hbm %s6, %s1203
          %s1206 = sshll.u32 %s1195, 4
          %s1207 = int_to_ptr.vmem [resolvable:$true] %s1206
          %1209 = dma.vmem_to_hbm [thread:$0]  %s1207, 32, %s1204, %s1192
        $region48: #{tpu_custom_call.1} parent=43 // pred_fallthru
          _
      $region44: #{tpu_custom_call.1} parent=5 // pred_fallthru
        _
      %p1210 = scmp.le.s32.totalorder 2, %s15
      // Predicated region
      $region49: #{tpu_custom_call.1} parent=5 // pred_check
        %p1211 = pneg %p1210
      $region50: #{tpu_custom_call.1} parent=5 // pred_check_branch
        %1213 = sbr.rel (%p1211) target = $region52
      $region51: #{tpu_custom_call.1} parent=5 // pred_region
        %s1214 = ssub.s32 %s15, 2
        // Predicated region
        $region53: #{tpu_custom_call.1} parent=51 // pred_check
          %p1215 = pneg %p175
        $region54: #{tpu_custom_call.1} parent=51 // pred_check_branch
          %1217 = sbr.rel (%p1215) target = $region56
        $region55: #{tpu_custom_call.1} parent=51 // pred_region
          %s1218 = sand.u32 %s160, 1
          %s1219 = scalar_lea.sflag [#allocation3], %s1218
          %s1220 = sand.u32 %s160, 1
          %s1221 = smul.addr %s1220, 2
          %s1222 = scalar_lea.vmem [#allocation2], %s1221
          %1223 = dma.done %s1219, 32
        $region56: #{tpu_custom_call.1} parent=51 // pred_fallthru
          _
      $region52: #{tpu_custom_call.1} parent=5 // pred_fallthru
        _
    $region6: #{tpu_custom_call.1} parent=1 // loop_footer
      %s19 = sadd.s32 1, %s15
    $region7: #{tpu_custom_call.1} parent=1 // loop_footer_branch
      %14 = sbr.rel target = $region3
    $region8: #{tpu_custom_call.1} parent=1 // loop_exit
      _
    %1224 = vsyncpa [#allocation3], 1
    %s1225 = scalar_lea.sflag [#allocation3], 1
    %1226 = vsyncpa %s1225, 1

</llo_original>
